<compile_context>
chip_gen: v7x
topology: tpu7x:2x2x1
jax: 0.10.0
libtpu: 0.0.40
codegen_flags: <defaults>
</compile_context>

<pallas_src>
import functools

import jax
import jax.numpy as jnp
from jax.experimental import pallas as pl
from jax.experimental.pallas import tpu as pltpu

IN_FEATURES = 28 * 28          # 784 (multiple of 8 -> full-dim block is legal)
HIDDEN = 16 * 16               # 256
OUT_FEATURES = 10
N_PAD = 128                    # lane-dense padded output width


def _round_up(n, m):
    return ((n + m - 1) // m) * m


def mlp_kernel(x_ref, w1_ref, b1_ref, w2_ref, b2_ref, out_ref):
    # In-kernel f32 -> bf16 cast of the streamed x tile (hidden under DMA).
    x = x_ref[...].astype(jnp.bfloat16)
    # fc1 (bf16 x bf16 -> f32 acc), bias + ReLU in f32.
    h = jnp.dot(x, w1_ref[...], preferred_element_type=jnp.float32)
    h = jnp.maximum(h + b1_ref[...], 0.0)
    # fc2 (bf16 x bf16 -> f32 acc), bias + sigmoid in f32, lane-dense (TB, 128) store.
    o = jnp.dot(h.astype(jnp.bfloat16), w2_ref[...],
                preferred_element_type=jnp.float32)
    out_ref[...] = jax.nn.sigmoid(o + b2_ref[...]).astype(out_ref.dtype)


def prepare_params(w1, b1, w2, b2):
    """One-time (outside the hot path) transpose / pad / cast of the PyTorch-layout
    parameters.  w1: (256, 784), b1: (256,), w2: (10, 256), b2: (10,)."""
    # fc1: (784, 256), bf16, no K padding.
    w1_t = w1.T.astype(jnp.bfloat16)
    b1_2d = b1.reshape(1, HIDDEN).astype(jnp.float32)
    # fc2: (256, 10) -> pad N to 128 (lane-dense output), bf16.
    w2_t = jnp.zeros((HIDDEN, N_PAD), jnp.bfloat16).at[:, :OUT_FEATURES].set(
        w2.T.astype(jnp.bfloat16))
    b2_2d = jnp.zeros((1, N_PAD), jnp.float32).at[:, :OUT_FEATURES].set(
        b2.astype(jnp.float32))
    return w1_t, b1_2d, w2_t, b2_2d


def _choose_tile(B, *, max_tile=2048, target_steps=4):
    """Pick a batch tile TB (multiple of 8, <= max_tile) aiming for ~target_steps
    grid steps, and the corresponding padded batch size."""
    B8 = _round_up(B, 8)
    tb = _round_up(max(B8 // target_steps, 1), 8)
    tb = min(max(tb, 8), max_tile)
    b_pad = _round_up(B8, tb)
    return tb, b_pad


@functools.partial(jax.jit, static_argnames=("max_tile",))
def mlp_forward(x_nchw, w1_t, b1_2d, w2_t, b2_2d, *, max_tile=2048):
    """x_nchw: (B, 1, 28, 28) float32.  Params come from prepare_params()."""
    B = x_nchw.shape[0]
    TB, B_pad = _choose_tile(B, max_tile=max_tile)
    grid = (B_pad // TB,)

    # Free reshape (== x.view(B, -1)); keep f32, no cast/K-pad prepass.
    x = x_nchw.reshape(B, IN_FEATURES)
    if B_pad != B:
        x = jnp.pad(x, ((0, B_pad - B), (0, 0)))

    # Real double-buffered VMEM need, with 2x headroom, clamped under 48 MiB
    # (stays well below the 64 MiB physical VMEM per v7x TensorCore).
    vmem_need = (2 * TB * IN_FEATURES * 4        # x double-buffer (f32)
                 + 2 * TB * N_PAD * 2            # out double-buffer (bf16)
                 + 2 * (IN_FEATURES * HIDDEN * 2 # w1 (bf16)
                        + HIDDEN * N_PAD * 2     # w2 (bf16)
                        + HIDDEN * 4 + N_PAD * 4))
    vmem_limit = int(min(max(2 * vmem_need, 4 << 20), 48 << 20))

    cost = pl.CostEstimate(
        flops=2 * B_pad * (IN_FEATURES * HIDDEN + HIDDEN * N_PAD),
        transcendentals=B_pad * N_PAD,
        bytes_accessed=(B_pad * IN_FEATURES * 4      # x stream (f32)
                        + IN_FEATURES * HIDDEN * 2   # w1 (bf16)
                        + HIDDEN * N_PAD * 2         # w2 (bf16)
                        + HIDDEN * 4 + N_PAD * 4     # biases (f32)
                        + B_pad * N_PAD * 2),        # output (bf16)
    )

    out_padded = pl.pallas_call(
        mlp_kernel,
        out_shape=jax.ShapeDtypeStruct((B_pad, N_PAD), jnp.bfloat16),
        grid_spec=pltpu.PrefetchScalarGridSpec(
            num_scalar_prefetch=0,
            grid=grid,
            in_specs=[
                pl.BlockSpec((TB, IN_FEATURES), lambda i: (i, 0)),    # x: streamed
                pl.BlockSpec((IN_FEATURES, HIDDEN), lambda i: (0, 0)),# w1: resident
                pl.BlockSpec((1, HIDDEN), lambda i: (0, 0)),          # b1: resident
                pl.BlockSpec((HIDDEN, N_PAD), lambda i: (0, 0)),      # w2: resident
                pl.BlockSpec((1, N_PAD), lambda i: (0, 0)),           # b2: resident
            ],
            out_specs=pl.BlockSpec((TB, N_PAD), lambda i: (i, 0)),
        ),
        compiler_params=pltpu.CompilerParams(
            dimension_semantics=("parallel",),
            vmem_limit_bytes=vmem_limit,
        ),
        cost_estimate=cost,
    )(x, w1_t, b1_2d, w2_t, b2_2d)

    # Drop batch padding and the 118 zero-padded output lanes; upcast outside.
    return out_padded[:B, :OUT_FEATURES].astype(jnp.float32)


def mlp_reference(x_nchw, w1, b1, w2, b2):
    B = x_nchw.shape[0]
    x = x_nchw.reshape(B, -1)
    h = jnp.maximum(x @ w1.T + b1, 0.0)
    return jax.nn.sigmoid(h @ w2.T + b2)


if __name__ == "__main__":
    key = jax.random.PRNGKey(0)
    k_x, k_w1, k_b1, k_w2, k_b2 = jax.random.split(key, 5)

    B = 2
    # MNIST-style input the module expects: (B, 1, 28, 28)
    x = jax.random.normal(k_x, (B, 1, 28, 28), dtype=jnp.float32)

    # Deterministic parameter init (uniform, PyTorch-Linear-like scale)
    s1 = 1.0 / jnp.sqrt(IN_FEATURES)
    s2 = 1.0 / jnp.sqrt(HIDDEN)
    w1 = jax.random.uniform(k_w1, (HIDDEN, IN_FEATURES), jnp.float32, -s1, s1)
    b1 = jax.random.uniform(k_b1, (HIDDEN,), jnp.float32, -s1, s1)
    w2 = jax.random.uniform(k_w2, (OUT_FEATURES, HIDDEN), jnp.float32, -s2, s2)
    b2 = jax.random.uniform(k_b2, (OUT_FEATURES,), jnp.float32, -s2, s2)

    # One-time parameter prep (transpose + pad + bf16 cast), outside the hot path.
    params = prepare_params(w1, b1, w2, b2)

    out = mlp_forward(x, *params)
    out = jax.block_until_ready(out)

    ref = mlp_reference(x, w1, b1, w2, b2)
    assert out.shape == (B, OUT_FEATURES)
    # bf16 weight/activation streams + bf16 output store => loosened tolerance.
    assert jnp.allclose(out, ref, atol=2e-2, rtol=2e-2), (
        float(jnp.max(jnp.abs(out - ref))))

    print("KERNEL_OK")
</pallas_src>

<mosaic_0001>
module attributes {stable_mosaic.version = 11 : i64} {
  func.func @mlp_kernel(%arg0: i32, %arg1: memref<8x784xf32, #tpu.memory_space<vmem>>, %arg2: memref<784x256xbf16, #tpu.memory_space<vmem>>, %arg3: memref<1x256xf32, #tpu.memory_space<vmem>>, %arg4: memref<256x128xbf16, #tpu.memory_space<vmem>>, %arg5: memref<1x128xf32, #tpu.memory_space<vmem>>, %arg6: memref<8x128xbf16, #tpu.memory_space<vmem>>) attributes {dimension_semantics = [#tpu.dimension_semantics<parallel>], iteration_bounds = array<i64: 1>, scalar_prefetch = 0 : i64, scratch_operands = 0 : i64, tpu.core_type = #tpu.core_type<tc>, window_params = [{transform_indices = @transform_0, window_bounds = array<i64: 8, 784>}, {pipeline_mode = #tpu.pipeline_mode<synchronous>, transform_indices = @transform_1, window_bounds = array<i64: 784, 256>}, {pipeline_mode = #tpu.pipeline_mode<synchronous>, transform_indices = @transform_2, window_bounds = array<i64: 1, 256>}, {pipeline_mode = #tpu.pipeline_mode<synchronous>, transform_indices = @transform_3, window_bounds = array<i64: 256, 128>}, {pipeline_mode = #tpu.pipeline_mode<synchronous>, transform_indices = @transform_4, window_bounds = array<i64: 1, 128>}, {transform_indices = @transform_5, window_bounds = array<i64: 8, 128>}]} {
    %c0 = arith.constant 0 : index
    %c0_0 = arith.constant 0 : index
    %0 = vector.load %arg1[%c0, %c0_0] : memref<8x784xf32, #tpu.memory_space<vmem>>, vector<8x784xf32>
    %1 = arith.truncf %0 : vector<8x784xf32> to vector<8x784xbf16>
    %c0_1 = arith.constant 0 : index
    %c0_2 = arith.constant 0 : index
    %2 = vector.load %arg2[%c0_1, %c0_2] : memref<784x256xbf16, #tpu.memory_space<vmem>>, vector<784x256xbf16>
    %cst = arith.constant dense<0.000000e+00> : vector<8x256xf32>
    %3 = tpu.matmul %1, %2, %cst {dimension_numbers = #tpu.dot_dimension_numbers<[1], [0], [0], [1], [0, 0, 1, 1], [], []>} : vector<8x784xbf16>, vector<784x256xbf16>, vector<8x256xf32> -> vector<8x256xf32>
    %c0_3 = arith.constant 0 : index
    %c0_4 = arith.constant 0 : index
    %4 = vector.load %arg3[%c0_3, %c0_4] : memref<1x256xf32, #tpu.memory_space<vmem>>, vector<1x256xf32>
    %5 = vector.broadcast %4 : vector<1x256xf32> to vector<8x256xf32>
    %6 = arith.addf %3, %5 : vector<8x256xf32>
    %cst_5 = arith.constant 0.000000e+00 : f32
    %7 = vector.broadcast %cst_5 : f32 to vector<8x256xf32>
    %8 = arith.maximumf %6, %7 : vector<8x256xf32>
    %9 = arith.truncf %8 : vector<8x256xf32> to vector<8x256xbf16>
    %c0_6 = arith.constant 0 : index
    %c0_7 = arith.constant 0 : index
    %10 = vector.load %arg4[%c0_6, %c0_7] : memref<256x128xbf16, #tpu.memory_space<vmem>>, vector<256x128xbf16>
    %cst_8 = arith.constant dense<0.000000e+00> : vector<8x128xf32>
    %11 = tpu.matmul %9, %10, %cst_8 {dimension_numbers = #tpu.dot_dimension_numbers<[1], [0], [0], [1], [0, 0, 1, 1], [], []>} : vector<8x256xbf16>, vector<256x128xbf16>, vector<8x128xf32> -> vector<8x128xf32>
    %c0_9 = arith.constant 0 : index
    %c0_10 = arith.constant 0 : index
    %12 = vector.load %arg5[%c0_9, %c0_10] : memref<1x128xf32, #tpu.memory_space<vmem>>, vector<1x128xf32>
    %13 = vector.broadcast %12 : vector<1x128xf32> to vector<8x128xf32>
    %14 = arith.addf %11, %13 : vector<8x128xf32>
    %15 = arith.negf %14 : vector<8x128xf32>
    %16 = math.exp %15 : vector<8x128xf32>
    %cst_11 = arith.constant 1.000000e+00 : f32
    %17 = vector.broadcast %cst_11 : f32 to vector<8x128xf32>
    %18 = arith.addf %17, %16 : vector<8x128xf32>
    %19 = arith.divf %17, %18 : vector<8x128xf32>
    %20 = arith.truncf %19 : vector<8x128xf32> to vector<8x128xbf16>
    %c0_12 = arith.constant 0 : index
    %c0_13 = arith.constant 0 : index
    %21 = vector.load %arg6[%c0_12, %c0_13] : memref<8x128xbf16, #tpu.memory_space<vmem>>, vector<8x128xbf16>
    tpu.vector_store %arg6[%c0_12, %c0_13], %20 {strides = array<i32>} : memref<8x128xbf16, #tpu.memory_space<vmem>>, vector<8x128xbf16>,
    return
  }
  func.func @transform_0(%arg0: i32) -> (i32, i32) {
    %c0_i32 = arith.constant 0 : i32
    %c0_i32_0 = arith.constant 0 : i32
    return %arg0, %c0_i32 : i32, i32
  }
  func.func @transform_1(%arg0: i32) -> (i32, i32) {
    %c0_i32 = arith.constant 0 : i32
    %c0_i32_0 = arith.constant 0 : i32
    %c0_i32_1 = arith.constant 0 : i32
    return %c0_i32, %c0_i32_0 : i32, i32
  }
  func.func @transform_2(%arg0: i32) -> (i32, i32) {
    %c0_i32 = arith.constant 0 : i32
    %c0_i32_0 = arith.constant 0 : i32
    %c0_i32_1 = arith.constant 0 : i32
    return %c0_i32, %c0_i32_0 : i32, i32
  }
  func.func @transform_3(%arg0: i32) -> (i32, i32) {
    %c0_i32 = arith.constant 0 : i32
    %c0_i32_0 = arith.constant 0 : i32
    %c0_i32_1 = arith.constant 0 : i32
    return %c0_i32, %c0_i32_0 : i32, i32
  }
  func.func @transform_4(%arg0: i32) -> (i32, i32) {
    %c0_i32 = arith.constant 0 : i32
    %c0_i32_0 = arith.constant 0 : i32
    %c0_i32_1 = arith.constant 0 : i32
    return %c0_i32, %c0_i32_0 : i32, i32
  }
  func.func @transform_5(%arg0: i32) -> (i32, i32) {
    %c0_i32 = arith.constant 0 : i32
    %c0_i32_0 = arith.constant 0 : i32
    return %arg0, %c0_i32 : i32, i32
  }
}

</mosaic_0001>

<llo_original>
// kernel: mlp_forward.1
$region0: #{mlp_forward.1}
  #allocation0 [shape = 'u32[]', space=smem, size = 0x4, offset = 0x4, fixed_abs, tag = 'smem constant byte address 0x4 - core index']
  #allocation1 [shape = 'u32[144,128]{1,0:T(1,128)}', space=vmem, size = 0x12000, scoped, tag = 'internal scratch']
  %s0 = inlined_call_operand.vmem [shape: f32[8,784], index: 0, kind: input, shape index: {}]
  %s1 = inlined_call_operand.hbm [shape: bf16[784,256], index: 1, kind: input, shape index: {}]
  %s2 = inlined_call_operand.vmem [shape: f32[1,256], index: 2, kind: input, shape index: {}]
  %s3 = inlined_call_operand.vmem [shape: bf16[256,128], index: 3, kind: input, shape index: {}]
  %s4 = inlined_call_operand.vmem [shape: f32[1,128], index: 4, kind: input, shape index: {}]
  %s5 = inlined_call_operand.vmem [shape: bf16[8,128], index: 5, kind: output, shape index: {}]
  %s6 = sld [smem:[#allocation0]]
  $region34: #{mlp_forward.1} parent=0
    _
  %s8 = ssub.s32 1, %s6
  %s9 = scalar_select 0, %s8, %s6
  $region1: #{mlp_forward.1} parent=0
    #allocation2 [shape = 'u8[401408]{0}', space=vmem, size = 0x62000, scoped, tag = 'input window, operand 1, single buffered']
    #allocation3 [shape = 's32[1]{0}', space=sflag, size = 0x4, scoped, tag = 'scoped memory for mlp_forward.1']
    %10 = vsyncpa [#allocation3], 0
    // Predicated region
    $region2: #{mlp_forward.1} parent=1 // pred_check
      _
    $region3: #{mlp_forward.1} parent=1 // pred_check_branch
      %12 = sbr.rel (0) target = $region5
    $region4: #{mlp_forward.1} parent=1 // pred_region
      _
    $region5: #{mlp_forward.1} parent=1 // pred_fallthru
      _
    // Predicated region
    $region6: #{mlp_forward.1} parent=1 // pred_check
      _
    $region7: #{mlp_forward.1} parent=1 // pred_check_branch
      %14 = sbr.rel (0) target = $region9
    $region8: #{mlp_forward.1} parent=1 // pred_region
      %s16 = ssub.s32 12544, 12544
      %17 = vsyncadd [#allocation3], %s16
      %s18 = sshll.u32 [#allocation2], 4
      %s19 = int_to_ptr.vmem [resolvable:$true] %s18
      %24 = dma.hbm_to_vmem [thread:$0]  %s1, 12544, %s19, [#allocation3], 128, 128, 8
    $region9: #{mlp_forward.1} parent=1 // pred_fallthru
      _
    // Predicated region
    $region10: #{mlp_forward.1} parent=1 // pred_check
      _
    $region11: #{mlp_forward.1} parent=1 // pred_check_branch
      %26 = sbr.rel (0) target = $region13
    $region12: #{mlp_forward.1} parent=1 // pred_region
      _
    $region13: #{mlp_forward.1} parent=1 // pred_fallthru
      _
    // Predicated region
    $region14: #{mlp_forward.1} parent=1 // pred_check
      _
    $region15: #{mlp_forward.1} parent=1 // pred_check_branch
      %28 = sbr.rel (0) target = $region17
    $region16: #{mlp_forward.1} parent=1 // pred_region
      _
    $region17: #{mlp_forward.1} parent=1 // pred_fallthru
      _
    // Predicated region
    $region18: #{mlp_forward.1} parent=1 // pred_check
      _
    $region19: #{mlp_forward.1} parent=1 // pred_check_branch
      %30 = sbr.rel (0) target = $region21
    $region20: #{mlp_forward.1} parent=1 // pred_region
      _
    $region21: #{mlp_forward.1} parent=1 // pred_fallthru
      _
    // Predicated region
    $region22: #{mlp_forward.1} parent=1 // pred_check
      _
    $region23: #{mlp_forward.1} parent=1 // pred_check_branch
      %32 = sbr.rel (0) target = $region25
    $region24: #{mlp_forward.1} parent=1 // pred_region
      %33 = dma.done [#allocation3], 12544
    $region25: #{mlp_forward.1} parent=1 // pred_fallthru
      _
    %v35 = vld [vmem:[%s0] sm:$0xff]
    %v36 = vld [vmem:[%s0 + $0x8] sm:$0xff]
    %v37 = vld [vmem:[%s0 + $0x10] sm:$0xff]
    %v38 = vld [vmem:[%s0 + $0x18] sm:$0xff]
    %v39 = vld [vmem:[%s0 + $0x20] sm:$0xff]
    %v40 = vld [vmem:[%s0 + $0x28] sm:$0xff]
    %v41 = vld [vmem:[%s0 + $0x30] sm:$0xff]
    %v42 = vpack.c.bf16 %v35, %v35
    %v43 = vpack.c.bf16 %v36, %v36
    %v44 = vpack.c.bf16 %v37, %v37
    %v45 = vpack.c.bf16 %v38, %v38
    %v46 = vpack.c.bf16 %v39, %v39
    %v47 = vpack.c.bf16 %v40, %v40
    %v48 = vpack.c.bf16 %v41, %v41
    %v49 = vld [vmem:[#allocation2] sm:$0xff]
    %v50 = vld [vmem:[#allocation2 + $0x8] sm:$0xff]
    %v51 = vld [vmem:[#allocation2 + $0x10] sm:$0xff]
    %v52 = vld [vmem:[#allocation2 + $0x18] sm:$0xff]
    %v53 = vld [vmem:[#allocation2 + $0x20] sm:$0xff]
    %v54 = vld [vmem:[#allocation2 + $0x28] sm:$0xff]
    %v55 = vld [vmem:[#allocation2 + $0x30] sm:$0xff]
    %v56 = vld [vmem:[#allocation2 + $0x38] sm:$0xff]
    %v57 = vld [vmem:[#allocation2 + $0x40] sm:$0xff]
    %v58 = vld [vmem:[#allocation2 + $0x48] sm:$0xff]
    %v59 = vld [vmem:[#allocation2 + $0x50] sm:$0xff]
    %v60 = vld [vmem:[#allocation2 + $0x58] sm:$0xff]
    %v61 = vld [vmem:[#allocation2 + $0x60] sm:$0xff]
    %v62 = vld [vmem:[#allocation2 + $0x68] sm:$0xff]
    %v63 = vld [vmem:[#allocation2 + $0x70] sm:$0xff]
    %v64 = vld [vmem:[#allocation2 + $0x78] sm:$0xff]
    %v65 = vld [vmem:[#allocation2 + $0x80] sm:$0xff]
    %v66 = vld [vmem:[#allocation2 + $0x88] sm:$0xff]
    %v67 = vld [vmem:[#allocation2 + $0x90] sm:$0xff]
    %v68 = vld [vmem:[#allocation2 + $0x98] sm:$0xff]
    %v69 = vld [vmem:[#allocation2 + $0xa0] sm:$0xff]
    %v70 = vld [vmem:[#allocation2 + $0xa8] sm:$0xff]
    %v71 = vld [vmem:[#allocation2 + $0xb0] sm:$0xff]
    %v72 = vld [vmem:[#allocation2 + $0xb8] sm:$0xff]
    %v73 = vld [vmem:[#allocation2 + $0xc0] sm:$0xff]
    %v74 = vld [vmem:[#allocation2 + $0xc8] sm:$0xff]
    %v75 = vld [vmem:[#allocation2 + $0xd0] sm:$0xff]
    %v76 = vld [vmem:[#allocation2 + $0xd8] sm:$0xff]
    %v77 = vld [vmem:[#allocation2 + $0xe0] sm:$0xff]
    %v78 = vld [vmem:[#allocation2 + $0xe8] sm:$0xff]
    %v79 = vld [vmem:[#allocation2 + $0xf0] sm:$0xff]
    %v80 = vld [vmem:[#allocation2 + $0xf8] sm:$0xff]
    %v81 = vld [vmem:[#allocation2 + $0x100] sm:$0xff]
    %v82 = vld [vmem:[#allocation2 + $0x108] sm:$0xff]
    %v83 = vld [vmem:[#allocation2 + $0x110] sm:$0xff]
    %v84 = vld [vmem:[#allocation2 + $0x118] sm:$0xff]
    %v85 = vld [vmem:[#allocation2 + $0x120] sm:$0xff]
    %v86 = vld [vmem:[#allocation2 + $0x128] sm:$0xff]
    %v87 = vld [vmem:[#allocation2 + $0x130] sm:$0xff]
    %v88 = vld [vmem:[#allocation2 + $0x138] sm:$0xff]
    %v89 = vld [vmem:[#allocation2 + $0x140] sm:$0xff]
    %v90 = vld [vmem:[#allocation2 + $0x148] sm:$0xff]
    %v91 = vld [vmem:[#allocation2 + $0x150] sm:$0xff]
    %v92 = vld [vmem:[#allocation2 + $0x158] sm:$0xff]
    %v93 = vld [vmem:[#allocation2 + $0x160] sm:$0xff]
    %v94 = vld [vmem:[#allocation2 + $0x168] sm:$0xff]
    %v95 = vld [vmem:[#allocation2 + $0x170] sm:$0xff]
    %v96 = vld [vmem:[#allocation2 + $0x178] sm:$0xff]
    %v97 = vld [vmem:[#allocation2 + $0x180] sm:$0xff]
    %v98 = vld [vmem:[#allocation2 + $0x188] sm:$0xff]
    %v99 = vld [vmem:[#allocation2 + $0x190] sm:$0xff]
    %v100 = vld [vmem:[#allocation2 + $0x198] sm:$0xff]
    %v101 = vld [vmem:[#allocation2 + $0x1a0] sm:$0xff]
    %v102 = vld [vmem:[#allocation2 + $0x1a8] sm:$0xff]
    %v103 = vld [vmem:[#allocation2 + $0x1b0] sm:$0xff]
    %v104 = vld [vmem:[#allocation2 + $0x1b8] sm:$0xff]
    %v105 = vld [vmem:[#allocation2 + $0x1c0] sm:$0xff]
    %v106 = vld [vmem:[#allocation2 + $0x1c8] sm:$0xff]
    %v107 = vld [vmem:[#allocation2 + $0x1d0] sm:$0xff]
    %v108 = vld [vmem:[#allocation2 + $0x1d8] sm:$0xff]
    %v109 = vld [vmem:[#allocation2 + $0x1e0] sm:$0xff]
    %v110 = vld [vmem:[#allocation2 + $0x1e8] sm:$0xff]
    %v111 = vld [vmem:[#allocation2 + $0x1f0] sm:$0xff]
    %v112 = vld [vmem:[#allocation2 + $0x1f8] sm:$0xff]
    %v113 = vld [vmem:[#allocation2 + $0x200] sm:$0xff]
    %v114 = vld [vmem:[#allocation2 + $0x208] sm:$0xff]
    %v115 = vld [vmem:[#allocation2 + $0x210] sm:$0xff]
    %v116 = vld [vmem:[#allocation2 + $0x218] sm:$0xff]
    %v117 = vld [vmem:[#allocation2 + $0x220] sm:$0xff]
    %v118 = vld [vmem:[#allocation2 + $0x228] sm:$0xff]
    %v119 = vld [vmem:[#allocation2 + $0x230] sm:$0xff]
    %v120 = vld [vmem:[#allocation2 + $0x238] sm:$0xff]
    %v121 = vld [vmem:[#allocation2 + $0x240] sm:$0xff]
    %v122 = vld [vmem:[#allocation2 + $0x248] sm:$0xff]
    %v123 = vld [vmem:[#allocation2 + $0x250] sm:$0xff]
    %v124 = vld [vmem:[#allocation2 + $0x258] sm:$0xff]
    %v125 = vld [vmem:[#allocation2 + $0x260] sm:$0xff]
    %v126 = vld [vmem:[#allocation2 + $0x268] sm:$0xff]
    %v127 = vld [vmem:[#allocation2 + $0x270] sm:$0xff]
    %v128 = vld [vmem:[#allocation2 + $0x278] sm:$0xff]
    %v129 = vld [vmem:[#allocation2 + $0x280] sm:$0xff]
    %v130 = vld [vmem:[#allocation2 + $0x288] sm:$0xff]
    %v131 = vld [vmem:[#allocation2 + $0x290] sm:$0xff]
    %v132 = vld [vmem:[#allocation2 + $0x298] sm:$0xff]
    %v133 = vld [vmem:[#allocation2 + $0x2a0] sm:$0xff]
    %v134 = vld [vmem:[#allocation2 + $0x2a8] sm:$0xff]
    %v135 = vld [vmem:[#allocation2 + $0x2b0] sm:$0xff]
    %v136 = vld [vmem:[#allocation2 + $0x2b8] sm:$0xff]
    %v137 = vld [vmem:[#allocation2 + $0x2c0] sm:$0xff]
    %v138 = vld [vmem:[#allocation2 + $0x2c8] sm:$0xff]
    %v139 = vld [vmem:[#allocation2 + $0x2d0] sm:$0xff]
    %v140 = vld [vmem:[#allocation2 + $0x2d8] sm:$0xff]
    %v141 = vld [vmem:[#allocation2 + $0x2e0] sm:$0xff]
    %v142 = vld [vmem:[#allocation2 + $0x2e8] sm:$0xff]
    %v143 = vld [vmem:[#allocation2 + $0x2f0] sm:$0xff]
    %v144 = vld [vmem:[#allocation2 + $0x2f8] sm:$0xff]
    %v145 = vld [vmem:[#allocation2 + $0x300] sm:$0xff]
    %v146 = vld [vmem:[#allocation2 + $0x308] sm:$0xff]
    %v147 = vld [vmem:[%s2] sm:$0x3]
    %v149 = vlaneseq
    %v150 = vshrl.u32 %v149, 7
    %v151 = vsub.s32 0, %v150
    %v152 = vrot.slane %v147, %v151
    %v153 = vlaneseq
    %v154 = vshrl.u32 %v153, 7
    %v155 = vsub.s32 1, %v154
    %v156 = vrot.slane %v147, %v155
    %v257 = vunpack.c.l.b16 %v49
    %v258 = vunpack.c.h.b16 %v49
    %v259 = vunpack.c.l.b16 %v50
    %v260 = vunpack.c.h.b16 %v50
    %v261 = vunpack.c.l.b16 %v51
    %v262 = vunpack.c.h.b16 %v51
    %v263 = vunpack.c.l.b16 %v52
    %v264 = vunpack.c.h.b16 %v52
    %v265 = vunpack.c.l.b16 %v53
    %v266 = vunpack.c.h.b16 %v53
    %v267 = vunpack.c.l.b16 %v54
    %v268 = vunpack.c.h.b16 %v54
    %v269 = vunpack.c.l.b16 %v55
    %v270 = vunpack.c.h.b16 %v55
    %v271 = vunpack.c.l.b16 %v56
    %v272 = vunpack.c.h.b16 %v56
    %v273 = vunpack.c.l.b16 %v57
    %v274 = vunpack.c.h.b16 %v57
    %v275 = vunpack.c.l.b16 %v58
    %v276 = vunpack.c.h.b16 %v58
    %v277 = vunpack.c.l.b16 %v59
    %v278 = vunpack.c.h.b16 %v59
    %v279 = vunpack.c.l.b16 %v60
    %v280 = vunpack.c.h.b16 %v60
    %v281 = vunpack.c.l.b16 %v61
    %v282 = vunpack.c.h.b16 %v61
    %v283 = vunpack.c.l.b16 %v62
    %v284 = vunpack.c.h.b16 %v62
    %v285 = vunpack.c.l.b16 %v63
    %v286 = vunpack.c.h.b16 %v63
    %v287 = vunpack.c.l.b16 %v64
    %v288 = vunpack.c.h.b16 %v64
    %v289 = vunpack.c.l.b16 %v65
    %v290 = vunpack.c.h.b16 %v65
    %v291 = vunpack.c.l.b16 %v66
    %v292 = vunpack.c.h.b16 %v66
    %v293 = vunpack.c.l.b16 %v67
    %v294 = vunpack.c.h.b16 %v67
    %v295 = vunpack.c.l.b16 %v68
    %v296 = vunpack.c.h.b16 %v68
    %v297 = vunpack.c.l.b16 %v69
    %v298 = vunpack.c.h.b16 %v69
    %v299 = vunpack.c.l.b16 %v70
    %v300 = vunpack.c.h.b16 %v70
    %v301 = vunpack.c.l.b16 %v71
    %v302 = vunpack.c.h.b16 %v71
    %v303 = vunpack.c.l.b16 %v72
    %v304 = vunpack.c.h.b16 %v72
    %v305 = vunpack.c.l.b16 %v73
    %v306 = vunpack.c.h.b16 %v73
    %v307 = vunpack.c.l.b16 %v74
    %v308 = vunpack.c.h.b16 %v74
    %v309 = vunpack.c.l.b16 %v75
    %v310 = vunpack.c.h.b16 %v75
    %v311 = vunpack.c.l.b16 %v76
    %v312 = vunpack.c.h.b16 %v76
    %v313 = vunpack.c.l.b16 %v77
    %v314 = vunpack.c.h.b16 %v77
    %v315 = vunpack.c.l.b16 %v78
    %v316 = vunpack.c.h.b16 %v78
    %v317 = vunpack.c.l.b16 %v79
    %v318 = vunpack.c.h.b16 %v79
    %v319 = vunpack.c.l.b16 %v80
    %v320 = vunpack.c.h.b16 %v80
    %v321 = vunpack.c.l.b16 %v81
    %v322 = vunpack.c.h.b16 %v81
    %v323 = vunpack.c.l.b16 %v82
    %v324 = vunpack.c.h.b16 %v82
    %v325 = vunpack.c.l.b16 %v83
    %v326 = vunpack.c.h.b16 %v83
    %v327 = vunpack.c.l.b16 %v84
    %v328 = vunpack.c.h.b16 %v84
    %v329 = vunpack.c.l.b16 %v85
    %v330 = vunpack.c.h.b16 %v85
    %v331 = vunpack.c.l.b16 %v86
    %v332 = vunpack.c.h.b16 %v86
    %v333 = vunpack.c.l.b16 %v87
    %v334 = vunpack.c.h.b16 %v87
    %v335 = vunpack.c.l.b16 %v88
    %v336 = vunpack.c.h.b16 %v88
    %v337 = vunpack.c.l.b16 %v89
    %v338 = vunpack.c.h.b16 %v89
    %v339 = vunpack.c.l.b16 %v90
    %v340 = vunpack.c.h.b16 %v90
    %v341 = vunpack.c.l.b16 %v91
    %v342 = vunpack.c.h.b16 %v91
    %v343 = vunpack.c.l.b16 %v92
    %v344 = vunpack.c.h.b16 %v92
    %v345 = vunpack.c.l.b16 %v93
    %v346 = vunpack.c.h.b16 %v93
    %v347 = vunpack.c.l.b16 %v94
    %v348 = vunpack.c.h.b16 %v94
    %v349 = vunpack.c.l.b16 %v95
    %v350 = vunpack.c.h.b16 %v95
    %v351 = vunpack.c.l.b16 %v96
    %v352 = vunpack.c.h.b16 %v96
    %v353 = vunpack.c.l.b16 %v97
    %v354 = vunpack.c.h.b16 %v97
    %v355 = vunpack.c.l.b16 %v98
    %v356 = vunpack.c.h.b16 %v98
    %v357 = vunpack.c.l.b16 %v99
    %v358 = vunpack.c.h.b16 %v99
    %v359 = vunpack.c.l.b16 %v100
    %v360 = vunpack.c.h.b16 %v100
    %v361 = vunpack.c.l.b16 %v101
    %v362 = vunpack.c.h.b16 %v101
    %v363 = vunpack.c.l.b16 %v102
    %v364 = vunpack.c.h.b16 %v102
    %v365 = vunpack.c.l.b16 %v103
    %v366 = vunpack.c.h.b16 %v103
    %v367 = vunpack.c.l.b16 %v104
    %v368 = vunpack.c.h.b16 %v104
    %v369 = vunpack.c.l.b16 %v105
    %v370 = vunpack.c.h.b16 %v105
    %v371 = vunpack.c.l.b16 %v106
    %v372 = vunpack.c.h.b16 %v106
    %v373 = vunpack.c.l.b16 %v107
    %v374 = vunpack.c.h.b16 %v107
    %v375 = vunpack.c.l.b16 %v108
    %v376 = vunpack.c.h.b16 %v108
    %v377 = vunpack.c.l.b16 %v109
    %v378 = vunpack.c.h.b16 %v109
    %v379 = vunpack.c.l.b16 %v110
    %v380 = vunpack.c.h.b16 %v110
    %v381 = vunpack.c.l.b16 %v111
    %v382 = vunpack.c.h.b16 %v111
    %v383 = vunpack.c.l.b16 %v112
    %v384 = vunpack.c.h.b16 %v112
    %v385 = vunpack.c.l.b16 %v113
    %v386 = vunpack.c.h.b16 %v113
    %v387 = vunpack.c.l.b16 %v114
    %v388 = vunpack.c.h.b16 %v114
    %v389 = vunpack.c.l.b16 %v115
    %v390 = vunpack.c.h.b16 %v115
    %v391 = vunpack.c.l.b16 %v116
    %v392 = vunpack.c.h.b16 %v116
    %v393 = vunpack.c.l.b16 %v117
    %v394 = vunpack.c.h.b16 %v117
    %v395 = vunpack.c.l.b16 %v118
    %v396 = vunpack.c.h.b16 %v118
    %v397 = vunpack.c.l.b16 %v119
    %v398 = vunpack.c.h.b16 %v119
    %v399 = vunpack.c.l.b16 %v120
    %v400 = vunpack.c.h.b16 %v120
    %v401 = vunpack.c.l.b16 %v121
    %v402 = vunpack.c.h.b16 %v121
    %v403 = vunpack.c.l.b16 %v122
    %v404 = vunpack.c.h.b16 %v122
    %v405 = vunpack.c.l.b16 %v123
    %v406 = vunpack.c.h.b16 %v123
    %v407 = vunpack.c.l.b16 %v124
    %v408 = vunpack.c.h.b16 %v124
    %v409 = vunpack.c.l.b16 %v125
    %v410 = vunpack.c.h.b16 %v125
    %v411 = vunpack.c.l.b16 %v126
    %v412 = vunpack.c.h.b16 %v126
    %v413 = vunpack.c.l.b16 %v127
    %v414 = vunpack.c.h.b16 %v127
    %v415 = vunpack.c.l.b16 %v128
    %v416 = vunpack.c.h.b16 %v128
    %v417 = vunpack.c.l.b16 %v129
    %v418 = vunpack.c.h.b16 %v129
    %v419 = vunpack.c.l.b16 %v130
    %v420 = vunpack.c.h.b16 %v130
    %v421 = vunpack.c.l.b16 %v131
    %v422 = vunpack.c.h.b16 %v131
    %v423 = vunpack.c.l.b16 %v132
    %v424 = vunpack.c.h.b16 %v132
    %v425 = vunpack.c.l.b16 %v133
    %v426 = vunpack.c.h.b16 %v133
    %v427 = vunpack.c.l.b16 %v134
    %v428 = vunpack.c.h.b16 %v134
    %v429 = vunpack.c.l.b16 %v135
    %v430 = vunpack.c.h.b16 %v135
    %v431 = vunpack.c.l.b16 %v136
    %v432 = vunpack.c.h.b16 %v136
    %v433 = vunpack.c.l.b16 %v137
    %v434 = vunpack.c.h.b16 %v137
    %v435 = vunpack.c.l.b16 %v138
    %v436 = vunpack.c.h.b16 %v138
    %v437 = vunpack.c.l.b16 %v139
    %v438 = vunpack.c.h.b16 %v139
    %v439 = vunpack.c.l.b16 %v140
    %v440 = vunpack.c.h.b16 %v140
    %v441 = vunpack.c.l.b16 %v141
    %v442 = vunpack.c.h.b16 %v141
    %v443 = vunpack.c.l.b16 %v142
    %v444 = vunpack.c.h.b16 %v142
    %v445 = vunpack.c.l.b16 %v143
    %v446 = vunpack.c.h.b16 %v143
    %v447 = vunpack.c.l.b16 %v144
    %v448 = vunpack.c.h.b16 %v144
    %v449 = vunpack.c.l.b16 %v145
    %v450 = vunpack.c.h.b16 %v145
    %v451 = vunpack.c.l.b16 %v146
    %v452 = vunpack.c.h.b16 %v146
    %v453 = vpack.c.b16 %v259, %v257
    %v454 = vpack.c.b16 %v260, %v258
    %v455 = vpack.c.b16 %v263, %v261
    %v456 = vpack.c.b16 %v264, %v262
    %v457 = vpack.c.b16 %v267, %v265
    %v458 = vpack.c.b16 %v268, %v266
    %v459 = vpack.c.b16 %v271, %v269
    %v460 = vpack.c.b16 %v272, %v270
    %v461 = vpack.c.b16 %v275, %v273
    %v462 = vpack.c.b16 %v276, %v274
    %v463 = vpack.c.b16 %v279, %v277
    %v464 = vpack.c.b16 %v280, %v278
    %v465 = vpack.c.b16 %v283, %v281
    %v466 = vpack.c.b16 %v284, %v282
    %v467 = vpack.c.b16 %v287, %v285
    %v468 = vpack.c.b16 %v288, %v286
    %v469 = vpack.c.b16 %v291, %v289
    %v470 = vpack.c.b16 %v292, %v290
    %v471 = vpack.c.b16 %v295, %v293
    %v472 = vpack.c.b16 %v296, %v294
    %v473 = vpack.c.b16 %v299, %v297
    %v474 = vpack.c.b16 %v300, %v298
    %v475 = vpack.c.b16 %v303, %v301
    %v476 = vpack.c.b16 %v304, %v302
    %v477 = vpack.c.b16 %v307, %v305
    %v478 = vpack.c.b16 %v308, %v306
    %v479 = vpack.c.b16 %v311, %v309
    %v480 = vpack.c.b16 %v312, %v310
    %v481 = vpack.c.b16 %v315, %v313
    %v482 = vpack.c.b16 %v316, %v314
    %v483 = vpack.c.b16 %v319, %v317
    %v484 = vpack.c.b16 %v320, %v318
    %v485 = vpack.c.b16 %v323, %v321
    %v486 = vpack.c.b16 %v324, %v322
    %v487 = vpack.c.b16 %v327, %v325
    %v488 = vpack.c.b16 %v328, %v326
    %v489 = vpack.c.b16 %v331, %v329
    %v490 = vpack.c.b16 %v332, %v330
    %v491 = vpack.c.b16 %v335, %v333
    %v492 = vpack.c.b16 %v336, %v334
    %v493 = vpack.c.b16 %v339, %v337
    %v494 = vpack.c.b16 %v340, %v338
    %v495 = vpack.c.b16 %v343, %v341
    %v496 = vpack.c.b16 %v344, %v342
    %v497 = vpack.c.b16 %v347, %v345
    %v498 = vpack.c.b16 %v348, %v346
    %v499 = vpack.c.b16 %v351, %v349
    %v500 = vpack.c.b16 %v352, %v350
    %v501 = vpack.c.b16 %v355, %v353
    %v502 = vpack.c.b16 %v356, %v354
    %v503 = vpack.c.b16 %v359, %v357
    %v504 = vpack.c.b16 %v360, %v358
    %v505 = vpack.c.b16 %v363, %v361
    %v506 = vpack.c.b16 %v364, %v362
    %v507 = vpack.c.b16 %v367, %v365
    %v508 = vpack.c.b16 %v368, %v366
    %v509 = vpack.c.b16 %v371, %v369
    %v510 = vpack.c.b16 %v372, %v370
    %v511 = vpack.c.b16 %v375, %v373
    %v512 = vpack.c.b16 %v376, %v374
    %v513 = vpack.c.b16 %v379, %v377
    %v514 = vpack.c.b16 %v380, %v378
    %v515 = vpack.c.b16 %v383, %v381
    %v516 = vpack.c.b16 %v384, %v382
    %v517 = vpack.c.b16 %v387, %v385
    %v518 = vpack.c.b16 %v388, %v386
    %v519 = vpack.c.b16 %v391, %v389
    %v520 = vpack.c.b16 %v392, %v390
    %v521 = vpack.c.b16 %v395, %v393
    %v522 = vpack.c.b16 %v396, %v394
    %v523 = vpack.c.b16 %v399, %v397
    %v524 = vpack.c.b16 %v400, %v398
    %v525 = vpack.c.b16 %v403, %v401
    %v526 = vpack.c.b16 %v404, %v402
    %v527 = vpack.c.b16 %v407, %v405
    %v528 = vpack.c.b16 %v408, %v406
    %v529 = vpack.c.b16 %v411, %v409
    %v530 = vpack.c.b16 %v412, %v410
    %v531 = vpack.c.b16 %v415, %v413
    %v532 = vpack.c.b16 %v416, %v414
    %v533 = vpack.c.b16 %v419, %v417
    %v534 = vpack.c.b16 %v420, %v418
    %v535 = vpack.c.b16 %v423, %v421
    %v536 = vpack.c.b16 %v424, %v422
    %v537 = vpack.c.b16 %v427, %v425
    %v538 = vpack.c.b16 %v428, %v426
    %v539 = vpack.c.b16 %v431, %v429
    %v540 = vpack.c.b16 %v432, %v430
    %v541 = vpack.c.b16 %v435, %v433
    %v542 = vpack.c.b16 %v436, %v434
    %v543 = vpack.c.b16 %v439, %v437
    %v544 = vpack.c.b16 %v440, %v438
    %v545 = vpack.c.b16 %v443, %v441
    %v546 = vpack.c.b16 %v444, %v442
    %v547 = vpack.c.b16 %v447, %v445
    %v548 = vpack.c.b16 %v448, %v446
    %v549 = vpack.c.b16 %v451, %v449
    %v550 = vpack.c.b16 %v452, %v450
    %vm649 = vcmask 130048
    %v651 = vsel %vm649, %v48, 0
    %653 = vmatprep.subr.bf16.mxu0 %v454
    %654 = vmatpush1.bf16.msra.mxu0 %v453
    %655 = vmatprep.subr.bf16.mxu0 %v456
    %656 = vmatpush1.bf16.msra.mxu0 %v455
    %657 = vmatprep.subr.bf16.mxu0 %v458
    %658 = vmatpush1.bf16.msra.mxu0 %v457
    %659 = vmatprep.subr.bf16.mxu0 %v460
    %660 = vmatpush1.bf16.msra.mxu0 %v459
    %661 = vmatprep.subr.bf16.mxu0 %v462
    %662 = vmatpush1.bf16.msra.mxu0 %v461
    %663 = vmatprep.subr.bf16.mxu0 %v464
    %664 = vmatpush1.bf16.msra.mxu0 %v463
    %665 = vmatprep.subr.bf16.mxu0 %v466
    %666 = vmatpush1.bf16.msra.mxu0 %v465
    %667 = vmatprep.subr.bf16.mxu0 %v468
    %668 = vmatpush1.bf16.msra.mxu0 %v467
    %669 = vmatprep.subr.bf16.mxu0 %v470
    %670 = vmatpush1.bf16.msra.mxu0 %v469
    %671 = vmatprep.subr.bf16.mxu0 %v472
    %672 = vmatpush1.bf16.msra.mxu0 %v471
    %673 = vmatprep.subr.bf16.mxu0 %v474
    %674 = vmatpush1.bf16.msra.mxu0 %v473
    %675 = vmatprep.subr.bf16.mxu0 %v476
    %676 = vmatpush1.bf16.msra.mxu0 %v475
    %677 = vmatprep.subr.bf16.mxu0 %v478
    %678 = vmatpush1.bf16.msra.mxu0 %v477
    %679 = vmatprep.subr.bf16.mxu0 %v480
    %680 = vmatpush1.bf16.msra.mxu0 %v479
    %681 = vmatprep.subr.bf16.mxu0 %v482
    %682 = vmatpush1.bf16.msra.mxu0 %v481
    %683 = vmatprep.subr.bf16.mxu0 %v484
    %684 = vmatpush1.bf16.msra.mxu0 %v483
    %685 = vmatprep.mubr.bf16.mxu0 %v43
    %686 = vmatmul.mubr.bf16.gmra.mrb[0].mxu0 %v42
    %v687 = vpop.f32.mrb[0].mxu0
    %v688 = vadd.f32 %v152, %v687
    %v689 = vpop.f32.mrb[0].mxu0
    %v690 = vadd.f32 %v156, %v689
    %v691 = vpop.f32.mrb[0].mxu0
    %v692 = vpop.f32.mrb[0].mxu0
    %693 = vdwg.mxu0
    %694 = vmatprep.subr.bf16.mxu0 %v486
    %695 = vmatpush1.bf16.msra.mxu0 %v485
    %696 = vmatprep.subr.bf16.mxu0 %v488
    %697 = vmatpush1.bf16.msra.mxu0 %v487
    %698 = vmatprep.subr.bf16.mxu0 %v490
    %699 = vmatpush1.bf16.msra.mxu0 %v489
    %700 = vmatprep.subr.bf16.mxu0 %v492
    %701 = vmatpush1.bf16.msra.mxu0 %v491
    %702 = vmatprep.subr.bf16.mxu0 %v494
    %703 = vmatpush1.bf16.msra.mxu0 %v493
    %704 = vmatprep.subr.bf16.mxu0 %v496
    %705 = vmatpush1.bf16.msra.mxu0 %v495
    %706 = vmatprep.subr.bf16.mxu0 %v498
    %707 = vmatpush1.bf16.msra.mxu0 %v497
    %708 = vmatprep.subr.bf16.mxu0 %v500
    %709 = vmatpush1.bf16.msra.mxu0 %v499
    %710 = vmatprep.subr.bf16.mxu0 %v502
    %711 = vmatpush1.bf16.msra.mxu0 %v501
    %712 = vmatprep.subr.bf16.mxu0 %v504
    %713 = vmatpush1.bf16.msra.mxu0 %v503
    %714 = vmatprep.subr.bf16.mxu0 %v506
    %715 = vmatpush1.bf16.msra.mxu0 %v505
    %716 = vmatprep.subr.bf16.mxu0 %v508
    %717 = vmatpush1.bf16.msra.mxu0 %v507
    %718 = vmatprep.subr.bf16.mxu0 %v510
    %719 = vmatpush1.bf16.msra.mxu0 %v509
    %720 = vmatprep.subr.bf16.mxu0 %v512
    %721 = vmatpush1.bf16.msra.mxu0 %v511
    %722 = vmatprep.subr.bf16.mxu0 %v514
    %723 = vmatpush1.bf16.msra.mxu0 %v513
    %724 = vmatprep.subr.bf16.mxu0 %v516
    %725 = vmatpush1.bf16.msra.mxu0 %v515
    %726 = vmatprep.mubr.bf16.mxu0 %v45
    %727 = vmatmul.mubr.bf16.gmra.mrb[0].mxu0 %v44
    %v728 = vpop.f32.mrb[0].mxu0
    %v729 = vadd.f32 %v688, %v728
    %v730 = vpop.f32.mrb[0].mxu0
    %v731 = vadd.f32 %v690, %v730
    %v732 = vpop.f32.mrb[0].mxu0
    %v733 = vpop.f32.mrb[0].mxu0
    %734 = vdwg.mxu0
    %735 = vmatprep.subr.bf16.mxu0 %v518
    %736 = vmatpush1.bf16.msra.mxu0 %v517
    %737 = vmatprep.subr.bf16.mxu0 %v520
    %738 = vmatpush1.bf16.msra.mxu0 %v519
    %739 = vmatprep.subr.bf16.mxu0 %v522
    %740 = vmatpush1.bf16.msra.mxu0 %v521
    %741 = vmatprep.subr.bf16.mxu0 %v524
    %742 = vmatpush1.bf16.msra.mxu0 %v523
    %743 = vmatprep.subr.bf16.mxu0 %v526
    %744 = vmatpush1.bf16.msra.mxu0 %v525
    %745 = vmatprep.subr.bf16.mxu0 %v528
    %746 = vmatpush1.bf16.msra.mxu0 %v527
    %747 = vmatprep.subr.bf16.mxu0 %v530
    %748 = vmatpush1.bf16.msra.mxu0 %v529
    %749 = vmatprep.subr.bf16.mxu0 %v532
    %750 = vmatpush1.bf16.msra.mxu0 %v531
    %751 = vmatprep.subr.bf16.mxu0 %v534
    %752 = vmatpush1.bf16.msra.mxu0 %v533
    %753 = vmatprep.subr.bf16.mxu0 %v536
    %754 = vmatpush1.bf16.msra.mxu0 %v535
    %755 = vmatprep.subr.bf16.mxu0 %v538
    %756 = vmatpush1.bf16.msra.mxu0 %v537
    %757 = vmatprep.subr.bf16.mxu0 %v540
    %758 = vmatpush1.bf16.msra.mxu0 %v539
    %759 = vmatprep.subr.bf16.mxu0 %v542
    %760 = vmatpush1.bf16.msra.mxu0 %v541
    %761 = vmatprep.subr.bf16.mxu0 %v544
    %762 = vmatpush1.bf16.msra.mxu0 %v543
    %763 = vmatprep.subr.bf16.mxu0 %v546
    %764 = vmatpush1.bf16.msra.mxu0 %v545
    %765 = vmatprep.subr.bf16.mxu0 %v548
    %766 = vmatpush1.bf16.msra.mxu0 %v547
    %767 = vmatprep.mubr.bf16.mxu0 %v47
    %768 = vmatmul.mubr.bf16.gmra.mrb[0].mxu0 %v46
    %v769 = vpop.f32.mrb[0].mxu0
    %v770 = vadd.f32 %v729, %v769
    %v771 = vpop.f32.mrb[0].mxu0
    %v772 = vadd.f32 %v731, %v771
    %v773 = vpop.f32.mrb[0].mxu0
    %v774 = vpop.f32.mrb[0].mxu0
    %775 = vdwg.mxu0
    %776 = vmatprep.subr.bf16.mxu0 %v550
    %777 = vmatpush1.bf16.msra.mxu0 %v549
    %778 = vmatprep.subr.bf16.mxu0 0
    %779 = vmatpush1.bf16.msra.mxu0 0
    %780 = vmatprep.subr.bf16.mxu0 0
    %781 = vmatpush1.bf16.msra.mxu0 0
    %782 = vmatprep.subr.bf16.mxu0 0
    %783 = vmatpush1.bf16.msra.mxu0 0
    %784 = vmatprep.subr.bf16.mxu0 0
    %785 = vmatpush1.bf16.msra.mxu0 0
    %786 = vmatprep.subr.bf16.mxu0 0
    %787 = vmatpush1.bf16.msra.mxu0 0
    %788 = vmatprep.subr.bf16.mxu0 0
    %789 = vmatpush1.bf16.msra.mxu0 0
    %790 = vmatprep.subr.bf16.mxu0 0
    %791 = vmatpush1.bf16.msra.mxu0 0
    %792 = vmatprep.subr.bf16.mxu0 0
    %793 = vmatpush1.bf16.msra.mxu0 0
    %794 = vmatprep.subr.bf16.mxu0 0
    %795 = vmatpush1.bf16.msra.mxu0 0
    %796 = vmatprep.subr.bf16.mxu0 0
    %797 = vmatpush1.bf16.msra.mxu0 0
    %798 = vmatprep.subr.bf16.mxu0 0
    %799 = vmatpush1.bf16.msra.mxu0 0
    %800 = vmatprep.subr.bf16.mxu0 0
    %801 = vmatpush1.bf16.msra.mxu0 0
    %802 = vmatprep.subr.bf16.mxu0 0
    %803 = vmatpush1.bf16.msra.mxu0 0
    %804 = vmatprep.subr.bf16.mxu0 0
    %805 = vmatpush1.bf16.msra.mxu0 0
    %806 = vmatprep.subr.bf16.mxu0 0
    %807 = vmatpush1.bf16.msra.mxu0 0
    %808 = vmatprep.mubr.bf16.mxu0 0
    %809 = vmatmul.mubr.bf16.gmra.mrb[0].mxu0 %v651
    %v810 = vpop.f32.mrb[0].mxu0
    %v811 = vadd.f32 %v770, %v810
    %v812 = vpop.f32.mrb[0].mxu0
    %v813 = vadd.f32 %v772, %v812
    %v814 = vpop.f32.mrb[0].mxu0
    %v815 = vpop.f32.mrb[0].mxu0
    %816 = vdwg.mxu0
    %v817 = vmax.f32 %v811, 0.0
    %v818 = vmax.f32 %v813, 0.0
    %v819 = vpack.c.bf16 %v817, %v817
    %v820 = vpack.c.bf16 %v818, %v818
    %v821 = vld [vmem:[%s3] sm:$0xf]
    %v822 = vld [vmem:[%s3 + $0x4] sm:$0xf]
    %v823 = vld [vmem:[%s3 + $0x8] sm:$0xf]
    %v824 = vld [vmem:[%s3 + $0xc] sm:$0xf]
    %v825 = vld [vmem:[%s3 + $0x10] sm:$0xf]
    %v826 = vld [vmem:[%s3 + $0x14] sm:$0xf]
    %v827 = vld [vmem:[%s3 + $0x18] sm:$0xf]
    %v828 = vld [vmem:[%s3 + $0x1c] sm:$0xf]
    %v829 = vld [vmem:[%s3 + $0x20] sm:$0xf]
    %v830 = vld [vmem:[%s3 + $0x24] sm:$0xf]
    %v831 = vld [vmem:[%s3 + $0x28] sm:$0xf]
    %v832 = vld [vmem:[%s3 + $0x2c] sm:$0xf]
    %v833 = vld [vmem:[%s3 + $0x30] sm:$0xf]
    %v834 = vld [vmem:[%s3 + $0x34] sm:$0xf]
    %v835 = vld [vmem:[%s3 + $0x38] sm:$0xf]
    %v836 = vld [vmem:[%s3 + $0x3c] sm:$0xf]
    %v837 = vld [vmem:[%s3 + $0x40] sm:$0xf]
    %v838 = vld [vmem:[%s3 + $0x44] sm:$0xf]
    %v839 = vld [vmem:[%s3 + $0x48] sm:$0xf]
    %v840 = vld [vmem:[%s3 + $0x4c] sm:$0xf]
    %v841 = vld [vmem:[%s3 + $0x50] sm:$0xf]
    %v842 = vld [vmem:[%s3 + $0x54] sm:$0xf]
    %v843 = vld [vmem:[%s3 + $0x58] sm:$0xf]
    %v844 = vld [vmem:[%s3 + $0x5c] sm:$0xf]
    %v845 = vld [vmem:[%s3 + $0x60] sm:$0xf]
    %v846 = vld [vmem:[%s3 + $0x64] sm:$0xf]
    %v847 = vld [vmem:[%s3 + $0x68] sm:$0xf]
    %v848 = vld [vmem:[%s3 + $0x6c] sm:$0xf]
    %v849 = vld [vmem:[%s3 + $0x70] sm:$0xf]
    %v850 = vld [vmem:[%s3 + $0x74] sm:$0xf]
    %v851 = vld [vmem:[%s3 + $0x78] sm:$0xf]
    %v852 = vld [vmem:[%s3 + $0x7c] sm:$0xf]
    %v853 = vld [vmem:[%s4] sm:$0x1]
    %v855 = vlaneseq
    %v856 = vshrl.u32 %v855, 7
    %v857 = vsub.s32 0, %v856
    %v858 = vrot.slane %v853, %v857
    %v892 = vunpack.c.l.b16 %v821
    %v893 = vunpack.c.l.b16 %v822
    %v894 = vunpack.c.l.b16 %v823
    %v895 = vunpack.c.l.b16 %v824
    %v896 = vunpack.c.l.b16 %v825
    %v897 = vunpack.c.l.b16 %v826
    %v898 = vunpack.c.l.b16 %v827
    %v899 = vunpack.c.l.b16 %v828
    %v900 = vunpack.c.l.b16 %v829
    %v901 = vunpack.c.l.b16 %v830
    %v902 = vunpack.c.l.b16 %v831
    %v903 = vunpack.c.l.b16 %v832
    %v904 = vunpack.c.l.b16 %v833
    %v905 = vunpack.c.l.b16 %v834
    %v906 = vunpack.c.l.b16 %v835
    %v907 = vunpack.c.l.b16 %v836
    %v908 = vunpack.c.l.b16 %v837
    %v909 = vunpack.c.l.b16 %v838
    %v910 = vunpack.c.l.b16 %v839
    %v911 = vunpack.c.l.b16 %v840
    %v912 = vunpack.c.l.b16 %v841
    %v913 = vunpack.c.l.b16 %v842
    %v914 = vunpack.c.l.b16 %v843
    %v915 = vunpack.c.l.b16 %v844
    %v916 = vunpack.c.l.b16 %v845
    %v917 = vunpack.c.l.b16 %v846
    %v918 = vunpack.c.l.b16 %v847
    %v919 = vunpack.c.l.b16 %v848
    %v920 = vunpack.c.l.b16 %v849
    %v921 = vunpack.c.l.b16 %v850
    %v922 = vunpack.c.l.b16 %v851
    %v923 = vunpack.c.l.b16 %v852
    %v924 = vpack.c.b16 %v893, %v892
    %v925 = vpack.c.b16 %v895, %v894
    %v926 = vpack.c.b16 %v897, %v896
    %v927 = vpack.c.b16 %v899, %v898
    %v928 = vpack.c.b16 %v901, %v900
    %v929 = vpack.c.b16 %v903, %v902
    %v930 = vpack.c.b16 %v905, %v904
    %v931 = vpack.c.b16 %v907, %v906
    %v932 = vpack.c.b16 %v909, %v908
    %v933 = vpack.c.b16 %v911, %v910
    %v934 = vpack.c.b16 %v913, %v912
    %v935 = vpack.c.b16 %v915, %v914
    %v936 = vpack.c.b16 %v917, %v916
    %v937 = vpack.c.b16 %v919, %v918
    %v938 = vpack.c.b16 %v921, %v920
    %v939 = vpack.c.b16 %v923, %v922
    %956 = vmatprep.subr.bf16.mxu0 0
    %957 = vmatpush1.bf16.msra.mxu0 %v924
    %958 = vmatprep.subr.bf16.mxu0 0
    %959 = vmatpush1.bf16.msra.mxu0 %v925
    %960 = vmatprep.subr.bf16.mxu0 0
    %961 = vmatpush1.bf16.msra.mxu0 %v926
    %962 = vmatprep.subr.bf16.mxu0 0
    %963 = vmatpush1.bf16.msra.mxu0 %v927
    %964 = vmatprep.subr.bf16.mxu0 0
    %965 = vmatpush1.bf16.msra.mxu0 %v928
    %966 = vmatprep.subr.bf16.mxu0 0
    %967 = vmatpush1.bf16.msra.mxu0 %v929
    %968 = vmatprep.subr.bf16.mxu0 0
    %969 = vmatpush1.bf16.msra.mxu0 %v930
    %970 = vmatprep.subr.bf16.mxu0 0
    %971 = vmatpush1.bf16.msra.mxu0 %v931
    %972 = vmatprep.subr.bf16.mxu0 0
    %973 = vmatpush1.bf16.msra.mxu0 %v932
    %974 = vmatprep.subr.bf16.mxu0 0
    %975 = vmatpush1.bf16.msra.mxu0 %v933
    %976 = vmatprep.subr.bf16.mxu0 0
    %977 = vmatpush1.bf16.msra.mxu0 %v934
    %978 = vmatprep.subr.bf16.mxu0 0
    %979 = vmatpush1.bf16.msra.mxu0 %v935
    %980 = vmatprep.subr.bf16.mxu0 0
    %981 = vmatpush1.bf16.msra.mxu0 %v936
    %982 = vmatprep.subr.bf16.mxu0 0
    %983 = vmatpush1.bf16.msra.mxu0 %v937
    %984 = vmatprep.subr.bf16.mxu0 0
    %985 = vmatpush1.bf16.msra.mxu0 %v938
    %986 = vmatprep.subr.bf16.mxu0 0
    %987 = vmatpush1.bf16.msra.mxu0 %v939
    %988 = vmatprep.mubr.bf16.mxu0 %v820
    %989 = vmatmul.mubr.bf16.gmra.mrb[0].mxu0 %v819
    %v990 = vpop.f32.mrb[0].mxu0
    %v991 = vadd.f32 %v858, %v990
    %v992 = vpop.f32.mrb[0].mxu0
    %v993 = vpop.f32.mrb[0].mxu0
    %v994 = vpop.f32.mrb[0].mxu0
    %995 = vdwg.mxu0
    %v996 = vxor.u32 %v991, 2147483648
    %v997 = vmul.f32 %v996, 1.442695
    %v998 = vpow.pop %v997
    %v999 = vadd.f32 %v998, 1.0
    %v1000 = vrcp.pop %v999
    %v1001 = vmul.f32 1.0, %v1000
    %v1002 = vpack.c.bf16 %v1001, %v1001
    %1003 = vst [vmem:[%s5] sm:$0xf] %v1002
    // Predicated region
    $region26: #{mlp_forward.1} parent=1 // pred_check
      _
    $region27: #{mlp_forward.1} parent=1 // pred_check_branch
      %1005 = sbr.rel (0) target = $region29
    $region28: #{mlp_forward.1} parent=1 // pred_region
      _
    $region29: #{mlp_forward.1} parent=1 // pred_fallthru
      _
    // Predicated region
    $region30: #{mlp_forward.1} parent=1 // pred_check
      _
    $region31: #{mlp_forward.1} parent=1 // pred_check_branch
      %1007 = sbr.rel (0) target = $region33
    $region32: #{mlp_forward.1} parent=1 // pred_region
      _
    $region33: #{mlp_forward.1} parent=1 // pred_fallthru
      _
    %1008 = vsyncpa [#allocation3], 1

</llo_original>
